<compile_context>
chip_gen: v6e
topology: v6e:2x2x1
jax: 0.10.0
libtpu: 0.0.40
codegen_flags: <defaults>
</compile_context>

<pallas_src>
import functools

import jax
import jax.numpy as jnp
from jax.experimental import pallas as pl
from jax.experimental.pallas import tpu as pltpu


def _round_up(n, m):
    return ((n + m - 1) // m) * m


def _autoencoder_kernel(x_ref, w1_ref, b1_ref, w2_ref, b2_ref,
                        w3_ref, b3_ref, w4_ref, b4_ref,
                        e_ref, xr_ref):
    cdt = w1_ref.dtype          # matmul-input dtype (bf16 by default)
    x = x_ref[...]              # (TM, in_p), already in cdt

    # ----- encoder -----
    h = jnp.dot(x, w1_ref[...], preferred_element_type=jnp.float32) + b1_ref[...]
    h = jnp.maximum(h, 0.0)                                     # ReLU (VPU, f32)
    e = jnp.dot(h.astype(cdt), w2_ref[...],
                preferred_element_type=jnp.float32) + b2_ref[...]
    e_ref[...] = e.astype(e_ref.dtype)

    # ----- decoder -----
    d = jnp.dot(e.astype(cdt), w3_ref[...],
                preferred_element_type=jnp.float32) + b3_ref[...]
    d = jnp.maximum(d, 0.0)                                     # ReLU
    xr = jnp.dot(d.astype(cdt), w4_ref[...],
                 preferred_element_type=jnp.float32) + b4_ref[...]
    xr_ref[...] = xr.astype(xr_ref.dtype)


@functools.partial(jax.jit, static_argnames=("block_m", "use_bf16"))
def autoencoder_forward(x, params, *, block_m=256, use_bf16=True):
    """x: (batch, input_dim) float32. params: PyTorch-style (out,in) weights.

    block_m: batch tile size. 256 is v7x-safe (64 MiB VMEM); on v5e/v6e
    (128 MiB VMEM) larger tiles (512-1024) can be used for big batches.
    """
    batch, input_dim = x.shape
    hidden_dim = params["w1"].shape[0]
    output_dim = params["w2"].shape[0]

    cdt = jnp.bfloat16 if use_bf16 else jnp.float32
    cbytes = jnp.dtype(cdt).itemsize

    # Lane-dense padded feature dims (multiples of 128).
    in_p = _round_up(input_dim, 128)
    hid_p = _round_up(hidden_dim, 128)
    out_p = _round_up(output_dim, 128)

    # Batch tile (sublane-aligned) and padded batch.
    tm = min(_round_up(batch, 8), _round_up(block_m, 8))
    bat_p = _round_up(batch, tm)
    n_blocks = bat_p // tm

    # --- pad + pre-transpose parameters (zero padding keeps the math exact) ---
    def prep_linear(w, b, kp, np_):
        # PyTorch (out,in) -> padded (kp, np_) in compute dtype; bias (1, np_) f32
        out_dim, in_dim = w.shape
        wt = jnp.zeros((kp, np_), cdt).at[:in_dim, :out_dim].set(w.T.astype(cdt))
        bp = jnp.zeros((1, np_), jnp.float32).at[0, :out_dim].set(
            b.astype(jnp.float32))
        return wt, bp

    w1, b1 = prep_linear(params["w1"], params["b1"], in_p, hid_p)
    w2, b2 = prep_linear(params["w2"], params["b2"], hid_p, out_p)
    w3, b3 = prep_linear(params["w3"], params["b3"], out_p, hid_p)
    w4, b4 = prep_linear(params["w4"], params["b4"], hid_p, in_p)

    xp = jnp.zeros((bat_p, in_p), cdt).at[:batch, :input_dim].set(
        x.astype(cdt))

    # --- cost estimate + VMEM budget ---
    wt_elems = in_p * hid_p + hid_p * out_p + out_p * hid_p + hid_p * in_p
    flops = 2 * bat_p * wt_elems
    bytes_accessed = int(bat_p * in_p * cbytes                    # x
                         + wt_elems * cbytes                      # weights
                         + 4 * (2 * hid_p + out_p + in_p)         # biases
                         + bat_p * (out_p + in_p) * 4)            # e, xr outputs

    weight_vmem = wt_elems * cbytes + 4 * (2 * hid_p + out_p + in_p)
    tile_vmem = 2 * (tm * in_p * cbytes + tm * out_p * 4 + tm * in_p * 4)  # dbl-buf io
    interm_vmem = 4 * tm * (2 * hid_p + out_p + in_p)             # h, e, d, xr f32
    vmem_limit = int(1.5 * (weight_vmem + tile_vmem + interm_vmem)) + (4 << 20)
    vmem_limit = max(16 << 20, min(vmem_limit, 128 << 20))        # safety floor/cap

    e_pad, xr_pad = pl.pallas_call(
        _autoencoder_kernel,
        out_shape=(
            jax.ShapeDtypeStruct((bat_p, out_p), x.dtype),   # e  (padded)
            jax.ShapeDtypeStruct((bat_p, in_p), x.dtype),    # xr (padded)
        ),
        grid=(n_blocks,),
        in_specs=[
            pl.BlockSpec((tm, in_p), lambda i: (i, 0)),      # x tile (pipelined)
            pl.BlockSpec((in_p, hid_p), lambda i: (0, 0)),   # w1 (resident)
            pl.BlockSpec((1, hid_p), lambda i: (0, 0)),      # b1
            pl.BlockSpec((hid_p, out_p), lambda i: (0, 0)),  # w2
            pl.BlockSpec((1, out_p), lambda i: (0, 0)),      # b2
            pl.BlockSpec((out_p, hid_p), lambda i: (0, 0)),  # w3
            pl.BlockSpec((1, hid_p), lambda i: (0, 0)),      # b3
            pl.BlockSpec((hid_p, in_p), lambda i: (0, 0)),   # w4
            pl.BlockSpec((1, in_p), lambda i: (0, 0)),       # b4
        ],
        out_specs=(
            pl.BlockSpec((tm, out_p), lambda i: (i, 0)),
            pl.BlockSpec((tm, in_p), lambda i: (i, 0)),
        ),
        compiler_params=pltpu.CompilerParams(
            dimension_semantics=("parallel",),               # megacore on v7x
            vmem_limit_bytes=vmem_limit,
        ),
        cost_estimate=pl.CostEstimate(
            flops=flops, transcendentals=0, bytes_accessed=bytes_accessed),
    )(xp, w1, b1, w2, b2, w3, b3, w4, b4)

    # Slice padded outputs back to the original shapes.
    return e_pad[:batch, :output_dim], xr_pad[:batch, :input_dim]


def init_params(key, input_dim, hidden_dim, output_dim):
    """Deterministic PyTorch-style (out, in) weights + (out,) biases."""
    ks = jax.random.split(key, 8)

    def lin(kw, kb, fan_in, fan_out):
        bound = 1.0 / (fan_in ** 0.5)
        w = jax.random.uniform(kw, (fan_out, fan_in), jnp.float32, -bound, bound)
        b = jax.random.uniform(kb, (fan_out,), jnp.float32, -bound, bound)
        return w, b

    w1, b1 = lin(ks[0], ks[1], input_dim, hidden_dim)
    w2, b2 = lin(ks[2], ks[3], hidden_dim, output_dim)
    w3, b3 = lin(ks[4], ks[5], output_dim, hidden_dim)
    w4, b4 = lin(ks[6], ks[7], hidden_dim, input_dim)
    return {"w1": w1, "b1": b1, "w2": w2, "b2": b2,
            "w3": w3, "b3": b3, "w4": w4, "b4": b4}


def reference_forward(x, p, use_bf16=False):
    """Pure-JAX reference. use_bf16=True mimics the kernel's bf16 matmul inputs."""
    cdt = jnp.bfloat16 if use_bf16 else x.dtype

    def lin(a, w, b):
        return jnp.dot(a.astype(cdt), w.T.astype(cdt),
                       preferred_element_type=jnp.float32) + b

    h = jnp.maximum(lin(x, p["w1"], p["b1"]), 0.0)
    e = lin(h, p["w2"], p["b2"])
    d = jnp.maximum(lin(e, p["w3"], p["b3"]), 0.0)
    xr = lin(d, p["w4"], p["b4"])
    return e, xr


if __name__ == "__main__":
    batch, input_dim, hidden_dim, output_dim = 8, 32, 64, 16

    key = jax.random.PRNGKey(0)
    kx, kp = jax.random.split(key)
    x = jax.random.normal(kx, (batch, input_dim), jnp.float32)
    params = init_params(kp, input_dim, hidden_dim, output_dim)

    e, xr = autoencoder_forward(x, params)
    jax.block_until_ready((e, xr))

    # Semantic check vs. the f32 PyTorch-equivalent forward (loose: bf16 MXU inputs).
    e_ref, xr_ref = reference_forward(x, params, use_bf16=False)
    assert jnp.allclose(e, e_ref, atol=5e-2, rtol=5e-2)
    assert jnp.allclose(xr, xr_ref, atol=5e-2, rtol=5e-2)

    # Numeric check vs. a reference using the same bf16-input / f32-accum recipe.
    e_refb, xr_refb = reference_forward(x, params, use_bf16=True)
    assert jnp.allclose(e, e_refb, atol=1e-2, rtol=1e-2)
    assert jnp.allclose(xr, xr_refb, atol=1e-2, rtol=1e-2)

    print("KERNEL_OK")
</pallas_src>

<mosaic_0001>
module attributes {stable_mosaic.version = 11 : i64} {
  func.func @_autoencoder_kernel(%arg0: i32, %arg1: memref<8x128xbf16, #tpu.memory_space<vmem>>, %arg2: memref<128x128xbf16, #tpu.memory_space<vmem>>, %arg3: memref<1x128xf32, #tpu.memory_space<vmem>>, %arg4: memref<128x128xbf16, #tpu.memory_space<vmem>>, %arg5: memref<1x128xf32, #tpu.memory_space<vmem>>, %arg6: memref<128x128xbf16, #tpu.memory_space<vmem>>, %arg7: memref<1x128xf32, #tpu.memory_space<vmem>>, %arg8: memref<128x128xbf16, #tpu.memory_space<vmem>>, %arg9: memref<1x128xf32, #tpu.memory_space<vmem>>, %arg10: memref<8x128xf32, #tpu.memory_space<vmem>>, %arg11: memref<8x128xf32, #tpu.memory_space<vmem>>) attributes {dimension_semantics = [#tpu.dimension_semantics<parallel>], iteration_bounds = array<i64: 1>, scalar_prefetch = 0 : i64, scratch_operands = 0 : i64, tpu.core_type = #tpu.core_type<tc>, window_params = [{transform_indices = @transform_0, window_bounds = array<i64: 8, 128>}, {pipeline_mode = #tpu.pipeline_mode<synchronous>, transform_indices = @transform_1, window_bounds = array<i64: 128, 128>}, {pipeline_mode = #tpu.pipeline_mode<synchronous>, transform_indices = @transform_2, window_bounds = array<i64: 1, 128>}, {pipeline_mode = #tpu.pipeline_mode<synchronous>, transform_indices = @transform_3, window_bounds = array<i64: 128, 128>}, {pipeline_mode = #tpu.pipeline_mode<synchronous>, transform_indices = @transform_4, window_bounds = array<i64: 1, 128>}, {pipeline_mode = #tpu.pipeline_mode<synchronous>, transform_indices = @transform_5, window_bounds = array<i64: 128, 128>}, {pipeline_mode = #tpu.pipeline_mode<synchronous>, transform_indices = @transform_6, window_bounds = array<i64: 1, 128>}, {pipeline_mode = #tpu.pipeline_mode<synchronous>, transform_indices = @transform_7, window_bounds = array<i64: 128, 128>}, {pipeline_mode = #tpu.pipeline_mode<synchronous>, transform_indices = @transform_8, window_bounds = array<i64: 1, 128>}, {transform_indices = @transform_9, window_bounds = array<i64: 8, 128>}, {transform_indices = @transform_10, window_bounds = array<i64: 8, 128>}]} {
    %c0 = arith.constant 0 : index
    %c0_0 = arith.constant 0 : index
    %0 = vector.load %arg1[%c0, %c0_0] : memref<8x128xbf16, #tpu.memory_space<vmem>>, vector<8x128xbf16>
    %c0_1 = arith.constant 0 : index
    %c0_2 = arith.constant 0 : index
    %1 = vector.load %arg2[%c0_1, %c0_2] : memref<128x128xbf16, #tpu.memory_space<vmem>>, vector<128x128xbf16>
    %cst = arith.constant dense<0.000000e+00> : vector<8x128xf32>
    %2 = tpu.matmul %0, %1, %cst {dimension_numbers = #tpu.dot_dimension_numbers<[1], [0], [0], [1], [0, 0, 1, 1], [], []>} : vector<8x128xbf16>, vector<128x128xbf16>, vector<8x128xf32> -> vector<8x128xf32>
    %c0_3 = arith.constant 0 : index
    %c0_4 = arith.constant 0 : index
    %3 = vector.load %arg3[%c0_3, %c0_4] : memref<1x128xf32, #tpu.memory_space<vmem>>, vector<1x128xf32>
    %4 = vector.broadcast %3 : vector<1x128xf32> to vector<8x128xf32>
    %5 = arith.addf %2, %4 : vector<8x128xf32>
    %cst_5 = arith.constant 0.000000e+00 : f32
    %6 = vector.broadcast %cst_5 : f32 to vector<8x128xf32>
    %7 = arith.maximumf %5, %6 : vector<8x128xf32>
    %8 = arith.truncf %7 : vector<8x128xf32> to vector<8x128xbf16>
    %c0_6 = arith.constant 0 : index
    %c0_7 = arith.constant 0 : index
    %9 = vector.load %arg4[%c0_6, %c0_7] : memref<128x128xbf16, #tpu.memory_space<vmem>>, vector<128x128xbf16>
    %cst_8 = arith.constant dense<0.000000e+00> : vector<8x128xf32>
    %10 = tpu.matmul %8, %9, %cst_8 {dimension_numbers = #tpu.dot_dimension_numbers<[1], [0], [0], [1], [0, 0, 1, 1], [], []>} : vector<8x128xbf16>, vector<128x128xbf16>, vector<8x128xf32> -> vector<8x128xf32>
    %c0_9 = arith.constant 0 : index
    %c0_10 = arith.constant 0 : index
    %11 = vector.load %arg5[%c0_9, %c0_10] : memref<1x128xf32, #tpu.memory_space<vmem>>, vector<1x128xf32>
    %12 = vector.broadcast %11 : vector<1x128xf32> to vector<8x128xf32>
    %13 = arith.addf %10, %12 : vector<8x128xf32>
    %c0_11 = arith.constant 0 : index
    %c0_12 = arith.constant 0 : index
    %14 = vector.load %arg10[%c0_11, %c0_12] : memref<8x128xf32, #tpu.memory_space<vmem>>, vector<8x128xf32>
    tpu.vector_store %arg10[%c0_11, %c0_12], %13 {strides = array<i32>} : memref<8x128xf32, #tpu.memory_space<vmem>>, vector<8x128xf32>,
    %15 = arith.truncf %13 : vector<8x128xf32> to vector<8x128xbf16>
    %c0_13 = arith.constant 0 : index
    %c0_14 = arith.constant 0 : index
    %16 = vector.load %arg6[%c0_13, %c0_14] : memref<128x128xbf16, #tpu.memory_space<vmem>>, vector<128x128xbf16>
    %cst_15 = arith.constant dense<0.000000e+00> : vector<8x128xf32>
    %17 = tpu.matmul %15, %16, %cst_15 {dimension_numbers = #tpu.dot_dimension_numbers<[1], [0], [0], [1], [0, 0, 1, 1], [], []>} : vector<8x128xbf16>, vector<128x128xbf16>, vector<8x128xf32> -> vector<8x128xf32>
    %c0_16 = arith.constant 0 : index
    %c0_17 = arith.constant 0 : index
    %18 = vector.load %arg7[%c0_16, %c0_17] : memref<1x128xf32, #tpu.memory_space<vmem>>, vector<1x128xf32>
    %19 = vector.broadcast %18 : vector<1x128xf32> to vector<8x128xf32>
    %20 = arith.addf %17, %19 : vector<8x128xf32>
    %cst_18 = arith.constant 0.000000e+00 : f32
    %21 = vector.broadcast %cst_18 : f32 to vector<8x128xf32>
    %22 = arith.maximumf %20, %21 : vector<8x128xf32>
    %23 = arith.truncf %22 : vector<8x128xf32> to vector<8x128xbf16>
    %c0_19 = arith.constant 0 : index
    %c0_20 = arith.constant 0 : index
    %24 = vector.load %arg8[%c0_19, %c0_20] : memref<128x128xbf16, #tpu.memory_space<vmem>>, vector<128x128xbf16>
    %cst_21 = arith.constant dense<0.000000e+00> : vector<8x128xf32>
    %25 = tpu.matmul %23, %24, %cst_21 {dimension_numbers = #tpu.dot_dimension_numbers<[1], [0], [0], [1], [0, 0, 1, 1], [], []>} : vector<8x128xbf16>, vector<128x128xbf16>, vector<8x128xf32> -> vector<8x128xf32>
    %c0_22 = arith.constant 0 : index
    %c0_23 = arith.constant 0 : index
    %26 = vector.load %arg9[%c0_22, %c0_23] : memref<1x128xf32, #tpu.memory_space<vmem>>, vector<1x128xf32>
    %27 = vector.broadcast %26 : vector<1x128xf32> to vector<8x128xf32>
    %28 = arith.addf %25, %27 : vector<8x128xf32>
    %c0_24 = arith.constant 0 : index
    %c0_25 = arith.constant 0 : index
    %29 = vector.load %arg11[%c0_24, %c0_25] : memref<8x128xf32, #tpu.memory_space<vmem>>, vector<8x128xf32>
    tpu.vector_store %arg11[%c0_24, %c0_25], %28 {strides = array<i32>} : memref<8x128xf32, #tpu.memory_space<vmem>>, vector<8x128xf32>,
    return
  }
  func.func @transform_0(%arg0: i32) -> (i32, i32) {
    %c0_i32 = arith.constant 0 : i32
    %c0_i32_0 = arith.constant 0 : i32
    return %arg0, %c0_i32 : i32, i32
  }
  func.func @transform_1(%arg0: i32) -> (i32, i32) {
    %c0_i32 = arith.constant 0 : i32
    %c0_i32_0 = arith.constant 0 : i32
    %c0_i32_1 = arith.constant 0 : i32
    return %c0_i32, %c0_i32_0 : i32, i32
  }
  func.func @transform_2(%arg0: i32) -> (i32, i32) {
    %c0_i32 = arith.constant 0 : i32
    %c0_i32_0 = arith.constant 0 : i32
    %c0_i32_1 = arith.constant 0 : i32
    return %c0_i32, %c0_i32_0 : i32, i32
  }
  func.func @transform_3(%arg0: i32) -> (i32, i32) {
    %c0_i32 = arith.constant 0 : i32
    %c0_i32_0 = arith.constant 0 : i32
    %c0_i32_1 = arith.constant 0 : i32
    return %c0_i32, %c0_i32_0 : i32, i32
  }
  func.func @transform_4(%arg0: i32) -> (i32, i32) {
    %c0_i32 = arith.constant 0 : i32
    %c0_i32_0 = arith.constant 0 : i32
    %c0_i32_1 = arith.constant 0 : i32
    return %c0_i32, %c0_i32_0 : i32, i32
  }
  func.func @transform_5(%arg0: i32) -> (i32, i32) {
    %c0_i32 = arith.constant 0 : i32
    %c0_i32_0 = arith.constant 0 : i32
    %c0_i32_1 = arith.constant 0 : i32
    return %c0_i32, %c0_i32_0 : i32, i32
  }
  func.func @transform_6(%arg0: i32) -> (i32, i32) {
    %c0_i32 = arith.constant 0 : i32
    %c0_i32_0 = arith.constant 0 : i32
    %c0_i32_1 = arith.constant 0 : i32
    return %c0_i32, %c0_i32_0 : i32, i32
  }
  func.func @transform_7(%arg0: i32) -> (i32, i32) {
    %c0_i32 = arith.constant 0 : i32
    %c0_i32_0 = arith.constant 0 : i32
    %c0_i32_1 = arith.constant 0 : i32
    return %c0_i32, %c0_i32_0 : i32, i32
  }
  func.func @transform_8(%arg0: i32) -> (i32, i32) {
    %c0_i32 = arith.constant 0 : i32
    %c0_i32_0 = arith.constant 0 : i32
    %c0_i32_1 = arith.constant 0 : i32
    return %c0_i32, %c0_i32_0 : i32, i32
  }
  func.func @transform_9(%arg0: i32) -> (i32, i32) {
    %c0_i32 = arith.constant 0 : i32
    %c0_i32_0 = arith.constant 0 : i32
    return %arg0, %c0_i32 : i32, i32
  }
  func.func @transform_10(%arg0: i32) -> (i32, i32) {
    %c0_i32 = arith.constant 0 : i32
    %c0_i32_0 = arith.constant 0 : i32
    return %arg0, %c0_i32 : i32, i32
  }
}

</mosaic_0001>

<llo_original>
// kernel: autoencoder_forward.1
$region0: #{autoencoder_forward.1}
  #allocation0 [shape = 'u32[]', space=smem, size = 0x4, offset = 0x4, fixed_abs, tag = 'smem constant byte address 0x4 - core index']
  #allocation1 [shape = 'u32[144,128]{1,0:T(1,128)}', space=vmem, size = 0x12000, scoped, tag = 'internal scratch']
  %s0 = inlined_call_operand.vmem [shape: bf16[8,128], index: 0, kind: input, shape index: {}]
  %s1 = inlined_call_operand.vmem [shape: bf16[128,128], index: 1, kind: input, shape index: {}]
  %s2 = inlined_call_operand.vmem [shape: f32[1,128], index: 2, kind: input, shape index: {}]
  %s3 = inlined_call_operand.vmem [shape: bf16[128,128], index: 3, kind: input, shape index: {}]
  %s4 = inlined_call_operand.vmem [shape: f32[1,128], index: 4, kind: input, shape index: {}]
  %s5 = inlined_call_operand.vmem [shape: bf16[128,128], index: 5, kind: input, shape index: {}]
  %s6 = inlined_call_operand.vmem [shape: f32[1,128], index: 6, kind: input, shape index: {}]
  %s7 = inlined_call_operand.vmem [shape: bf16[128,128], index: 7, kind: input, shape index: {}]
  %s8 = inlined_call_operand.vmem [shape: f32[1,128], index: 8, kind: input, shape index: {}]
  %s9 = inlined_call_operand.hbm [shape: f32[8,128], index: 9, kind: output, shape index: {0}]
  %s10 = inlined_call_operand.hbm [shape: f32[8,128], index: 10, kind: output, shape index: {1}]
  %11 = xla_tuple %s9, %s10
  %s12 = sld [smem:[#allocation0]]
  $region54: #{autoencoder_forward.1} parent=0
    _
  %s14 = ssub.s32 1, %s12
  %s15 = scalar_select 0, %s14, %s12
  $region1: #{autoencoder_forward.1} parent=0
    #allocation2 [shape = 'u8[4096]{0}', space=vmem, size = 0x1000, scoped, tag = 'output window, operand 0, single buffered']
    #allocation3 [shape = 's32[1]{0}', space=sflag, size = 0x4, scoped, tag = 'scoped memory for autoencoder_forward.1']
    #allocation4 [shape = 'u8[4096]{0}', space=vmem, size = 0x1000, scoped, tag = 'output window, operand 1, single buffered']
    #allocation5 [shape = 's32[1]{0}', space=sflag, size = 0x4, scoped, tag = 'scoped memory for autoencoder_forward.1']
    %16 = vsyncpa [#allocation3], 0
    %17 = vsyncpa [#allocation5], 0
    // Predicated region
    $region2: #{autoencoder_forward.1} parent=1 // pred_check
      _
    $region3: #{autoencoder_forward.1} parent=1 // pred_check_branch
      %19 = sbr.rel (0) target = $region5
    $region4: #{autoencoder_forward.1} parent=1 // pred_region
      _
    $region5: #{autoencoder_forward.1} parent=1 // pred_fallthru
      _
    // Predicated region
    $region6: #{autoencoder_forward.1} parent=1 // pred_check
      _
    $region7: #{autoencoder_forward.1} parent=1 // pred_check_branch
      %21 = sbr.rel (0) target = $region9
    $region8: #{autoencoder_forward.1} parent=1 // pred_region
      _
    $region9: #{autoencoder_forward.1} parent=1 // pred_fallthru
      _
    // Predicated region
    $region10: #{autoencoder_forward.1} parent=1 // pred_check
      _
    $region11: #{autoencoder_forward.1} parent=1 // pred_check_branch
      %23 = sbr.rel (0) target = $region13
    $region12: #{autoencoder_forward.1} parent=1 // pred_region
      _
    $region13: #{autoencoder_forward.1} parent=1 // pred_fallthru
      _
    // Predicated region
    $region14: #{autoencoder_forward.1} parent=1 // pred_check
      _
    $region15: #{autoencoder_forward.1} parent=1 // pred_check_branch
      %25 = sbr.rel (0) target = $region17
    $region16: #{autoencoder_forward.1} parent=1 // pred_region
      _
    $region17: #{autoencoder_forward.1} parent=1 // pred_fallthru
      _
    // Predicated region
    $region18: #{autoencoder_forward.1} parent=1 // pred_check
      _
    $region19: #{autoencoder_forward.1} parent=1 // pred_check_branch
      %27 = sbr.rel (0) target = $region21
    $region20: #{autoencoder_forward.1} parent=1 // pred_region
      _
    $region21: #{autoencoder_forward.1} parent=1 // pred_fallthru
      _
    // Predicated region
    $region22: #{autoencoder_forward.1} parent=1 // pred_check
      _
    $region23: #{autoencoder_forward.1} parent=1 // pred_check_branch
      %29 = sbr.rel (0) target = $region25
    $region24: #{autoencoder_forward.1} parent=1 // pred_region
      _
    $region25: #{autoencoder_forward.1} parent=1 // pred_fallthru
      _
    // Predicated region
    $region26: #{autoencoder_forward.1} parent=1 // pred_check
      _
    $region27: #{autoencoder_forward.1} parent=1 // pred_check_branch
      %31 = sbr.rel (0) target = $region29
    $region28: #{autoencoder_forward.1} parent=1 // pred_region
      _
    $region29: #{autoencoder_forward.1} parent=1 // pred_fallthru
      _
    // Predicated region
    $region30: #{autoencoder_forward.1} parent=1 // pred_check
      _
    $region31: #{autoencoder_forward.1} parent=1 // pred_check_branch
      %33 = sbr.rel (0) target = $region33
    $region32: #{autoencoder_forward.1} parent=1 // pred_region
      _
    $region33: #{autoencoder_forward.1} parent=1 // pred_fallthru
      _
    // Predicated region
    $region34: #{autoencoder_forward.1} parent=1 // pred_check
      _
    $region35: #{autoencoder_forward.1} parent=1 // pred_check_branch
      %35 = sbr.rel (0) target = $region37
    $region36: #{autoencoder_forward.1} parent=1 // pred_region
      _
    $region37: #{autoencoder_forward.1} parent=1 // pred_fallthru
      _
    %v37 = vld [vmem:[%s0] sm:$0xf]
    %v38 = vld [vmem:[%s1] sm:$0xf]
    %v39 = vld [vmem:[%s1 + $0x4] sm:$0xf]
    %v40 = vld [vmem:[%s1 + $0x8] sm:$0xf]
    %v41 = vld [vmem:[%s1 + $0xc] sm:$0xf]
    %v42 = vld [vmem:[%s1 + $0x10] sm:$0xf]
    %v43 = vld [vmem:[%s1 + $0x14] sm:$0xf]
    %v44 = vld [vmem:[%s1 + $0x18] sm:$0xf]
    %v45 = vld [vmem:[%s1 + $0x1c] sm:$0xf]
    %v46 = vld [vmem:[%s1 + $0x20] sm:$0xf]
    %v47 = vld [vmem:[%s1 + $0x24] sm:$0xf]
    %v48 = vld [vmem:[%s1 + $0x28] sm:$0xf]
    %v49 = vld [vmem:[%s1 + $0x2c] sm:$0xf]
    %v50 = vld [vmem:[%s1 + $0x30] sm:$0xf]
    %v51 = vld [vmem:[%s1 + $0x34] sm:$0xf]
    %v52 = vld [vmem:[%s1 + $0x38] sm:$0xf]
    %v53 = vld [vmem:[%s1 + $0x3c] sm:$0xf]
    %v54 = vld [vmem:[%s2] sm:$0x1]
    %v56 = vlaneseq
    %v57 = vshrl.u32 %v56, 7
    %v58 = vsub.s32 0, %v57
    %v59 = vrot.slane %v54, %v58
    %v77 = vunpack.c.l.b16 %v38
    %v78 = vunpack.c.l.b16 %v39
    %v79 = vunpack.c.l.b16 %v40
    %v80 = vunpack.c.l.b16 %v41
    %v81 = vunpack.c.l.b16 %v42
    %v82 = vunpack.c.l.b16 %v43
    %v83 = vunpack.c.l.b16 %v44
    %v84 = vunpack.c.l.b16 %v45
    %v85 = vunpack.c.l.b16 %v46
    %v86 = vunpack.c.l.b16 %v47
    %v87 = vunpack.c.l.b16 %v48
    %v88 = vunpack.c.l.b16 %v49
    %v89 = vunpack.c.l.b16 %v50
    %v90 = vunpack.c.l.b16 %v51
    %v91 = vunpack.c.l.b16 %v52
    %v92 = vunpack.c.l.b16 %v53
    %v93 = vpack.c.b16 %v78, %v77
    %v94 = vpack.c.b16 %v80, %v79
    %v95 = vpack.c.b16 %v82, %v81
    %v96 = vpack.c.b16 %v84, %v83
    %v97 = vpack.c.b16 %v86, %v85
    %v98 = vpack.c.b16 %v88, %v87
    %v99 = vpack.c.b16 %v90, %v89
    %v100 = vpack.c.b16 %v92, %v91
    %109 = vmatprep.subr.bf16.mxu0 0
    %110 = vmatpush1.bf16.msra.mxu0 %v100
    %111 = vmatprep.subr.bf16.mxu0 0
    %112 = vmatpush1.bf16.msra.mxu0 %v99
    %113 = vmatprep.subr.bf16.mxu0 0
    %114 = vmatpush1.bf16.msra.mxu0 %v98
    %115 = vmatprep.subr.bf16.mxu0 0
    %116 = vmatpush1.bf16.msra.mxu0 %v97
    %117 = vmatprep.subr.bf16.mxu0 0
    %118 = vmatpush1.bf16.msra.mxu0 %v96
    %119 = vmatprep.subr.bf16.mxu0 0
    %120 = vmatpush1.bf16.msra.mxu0 %v95
    %121 = vmatprep.subr.bf16.mxu0 0
    %122 = vmatpush1.bf16.msra.mxu0 %v94
    %123 = vmatprep.subr.bf16.mxu0 0
    %124 = vmatpush1.bf16.msra.mxu0 %v93
    %125 = vmatprep.subr.bf16.mxu0 0
    %126 = vmatpush2.bf16.msra.mxu0 0
    %127 = vmatprep.subr.bf16.mxu0 0
    %128 = vmatpush2.bf16.msra.mxu0 0
    %129 = vmatprep.subr.bf16.mxu0 0
    %130 = vmatpush2.bf16.msra.mxu0 0
    %131 = vmatprep.subr.bf16.mxu0 0
    %132 = vmatpush2.bf16.msra.mxu0 0
    %133 = vmatprep.subr.bf16.mxu0 0
    %134 = vmatpush2.bf16.msra.mxu0 0
    %135 = vmatprep.subr.bf16.mxu0 0
    %136 = vmatpush2.bf16.msra.mxu0 0
    %137 = vmatprep.subr.bf16.mxu0 0
    %138 = vmatpush2.bf16.msra.mxu0 0
    %139 = vmatprep.subr.bf16.mxu0 0
    %140 = vmatpush2.bf16.msra.mxu0 0
    %141 = vmatprep.mubr.bf16.mxu0 0
    %142 = vmatmul.mubr.bf16.gmra.mxu0 %v37
    %v143 = vpop.f32.mrf.mxu0
    %v144 = vadd.f32 %v59, %v143
    %v145 = vpop.f32.mrf.mxu0
    %v146 = vpop.f32.mrf.mxu0
    %v147 = vpop.f32.mrf.mxu0
    %148 = vdwg.mxu0
    %v149 = vmax.f32 %v144, 0.0
    %v150 = vpack.c.bf16 %v149, %v149
    %v151 = vld [vmem:[%s3] sm:$0xf]
    %v152 = vld [vmem:[%s3 + $0x4] sm:$0xf]
    %v153 = vld [vmem:[%s3 + $0x8] sm:$0xf]
    %v154 = vld [vmem:[%s3 + $0xc] sm:$0xf]
    %v155 = vld [vmem:[%s3 + $0x10] sm:$0xf]
    %v156 = vld [vmem:[%s3 + $0x14] sm:$0xf]
    %v157 = vld [vmem:[%s3 + $0x18] sm:$0xf]
    %v158 = vld [vmem:[%s3 + $0x1c] sm:$0xf]
    %v159 = vld [vmem:[%s3 + $0x20] sm:$0xf]
    %v160 = vld [vmem:[%s3 + $0x24] sm:$0xf]
    %v161 = vld [vmem:[%s3 + $0x28] sm:$0xf]
    %v162 = vld [vmem:[%s3 + $0x2c] sm:$0xf]
    %v163 = vld [vmem:[%s3 + $0x30] sm:$0xf]
    %v164 = vld [vmem:[%s3 + $0x34] sm:$0xf]
    %v165 = vld [vmem:[%s3 + $0x38] sm:$0xf]
    %v166 = vld [vmem:[%s3 + $0x3c] sm:$0xf]
    %v167 = vld [vmem:[%s4] sm:$0x1]
    %v169 = vlaneseq
    %v170 = vshrl.u32 %v169, 7
    %v171 = vsub.s32 0, %v170
    %v172 = vrot.slane %v167, %v171
    %v190 = vunpack.c.l.b16 %v151
    %v191 = vunpack.c.l.b16 %v152
    %v192 = vunpack.c.l.b16 %v153
    %v193 = vunpack.c.l.b16 %v154
    %v194 = vunpack.c.l.b16 %v155
    %v195 = vunpack.c.l.b16 %v156
    %v196 = vunpack.c.l.b16 %v157
    %v197 = vunpack.c.l.b16 %v158
    %v198 = vunpack.c.l.b16 %v159
    %v199 = vunpack.c.l.b16 %v160
    %v200 = vunpack.c.l.b16 %v161
    %v201 = vunpack.c.l.b16 %v162
    %v202 = vunpack.c.l.b16 %v163
    %v203 = vunpack.c.l.b16 %v164
    %v204 = vunpack.c.l.b16 %v165
    %v205 = vunpack.c.l.b16 %v166
    %v206 = vpack.c.b16 %v191, %v190
    %v207 = vpack.c.b16 %v193, %v192
    %v208 = vpack.c.b16 %v195, %v194
    %v209 = vpack.c.b16 %v197, %v196
    %v210 = vpack.c.b16 %v199, %v198
    %v211 = vpack.c.b16 %v201, %v200
    %v212 = vpack.c.b16 %v203, %v202
    %v213 = vpack.c.b16 %v205, %v204
    %222 = vmatprep.subr.bf16.mxu0 0
    %223 = vmatpush1.bf16.msra.mxu0 %v213
    %224 = vmatprep.subr.bf16.mxu0 0
    %225 = vmatpush1.bf16.msra.mxu0 %v212
    %226 = vmatprep.subr.bf16.mxu0 0
    %227 = vmatpush1.bf16.msra.mxu0 %v211
    %228 = vmatprep.subr.bf16.mxu0 0
    %229 = vmatpush1.bf16.msra.mxu0 %v210
    %230 = vmatprep.subr.bf16.mxu0 0
    %231 = vmatpush1.bf16.msra.mxu0 %v209
    %232 = vmatprep.subr.bf16.mxu0 0
    %233 = vmatpush1.bf16.msra.mxu0 %v208
    %234 = vmatprep.subr.bf16.mxu0 0
    %235 = vmatpush1.bf16.msra.mxu0 %v207
    %236 = vmatprep.subr.bf16.mxu0 0
    %237 = vmatpush1.bf16.msra.mxu0 %v206
    %238 = vmatprep.subr.bf16.mxu0 0
    %239 = vmatpush2.bf16.msra.mxu0 0
    %240 = vmatprep.subr.bf16.mxu0 0
    %241 = vmatpush2.bf16.msra.mxu0 0
    %242 = vmatprep.subr.bf16.mxu0 0
    %243 = vmatpush2.bf16.msra.mxu0 0
    %244 = vmatprep.subr.bf16.mxu0 0
    %245 = vmatpush2.bf16.msra.mxu0 0
    %246 = vmatprep.subr.bf16.mxu0 0
    %247 = vmatpush2.bf16.msra.mxu0 0
    %248 = vmatprep.subr.bf16.mxu0 0
    %249 = vmatpush2.bf16.msra.mxu0 0
    %250 = vmatprep.subr.bf16.mxu0 0
    %251 = vmatpush2.bf16.msra.mxu0 0
    %252 = vmatprep.subr.bf16.mxu0 0
    %253 = vmatpush2.bf16.msra.mxu0 0
    %254 = vmatprep.mubr.bf16.mxu0 0
    %255 = vmatmul.mubr.bf16.gmra.mxu0 %v150
    %v256 = vpop.f32.mrf.mxu0
    %v257 = vadd.f32 %v172, %v256
    %v258 = vpop.f32.mrf.mxu0
    %v259 = vpop.f32.mrf.mxu0
    %v260 = vpop.f32.mrf.mxu0
    %261 = vdwg.mxu0
    %262 = vst [vmem:[#allocation2] sm:$0xff] %v257
    %v263 = vpack.c.bf16 %v257, %v257
    %v264 = vld [vmem:[%s5] sm:$0xf]
    %v265 = vld [vmem:[%s5 + $0x4] sm:$0xf]
    %v266 = vld [vmem:[%s5 + $0x8] sm:$0xf]
    %v267 = vld [vmem:[%s5 + $0xc] sm:$0xf]
    %v268 = vld [vmem:[%s5 + $0x10] sm:$0xf]
    %v269 = vld [vmem:[%s5 + $0x14] sm:$0xf]
    %v270 = vld [vmem:[%s5 + $0x18] sm:$0xf]
    %v271 = vld [vmem:[%s5 + $0x1c] sm:$0xf]
    %v272 = vld [vmem:[%s5 + $0x20] sm:$0xf]
    %v273 = vld [vmem:[%s5 + $0x24] sm:$0xf]
    %v274 = vld [vmem:[%s5 + $0x28] sm:$0xf]
    %v275 = vld [vmem:[%s5 + $0x2c] sm:$0xf]
    %v276 = vld [vmem:[%s5 + $0x30] sm:$0xf]
    %v277 = vld [vmem:[%s5 + $0x34] sm:$0xf]
    %v278 = vld [vmem:[%s5 + $0x38] sm:$0xf]
    %v279 = vld [vmem:[%s5 + $0x3c] sm:$0xf]
    %v280 = vld [vmem:[%s6] sm:$0x1]
    %v282 = vlaneseq
    %v283 = vshrl.u32 %v282, 7
    %v284 = vsub.s32 0, %v283
    %v285 = vrot.slane %v280, %v284
    %v303 = vunpack.c.l.b16 %v264
    %v304 = vunpack.c.l.b16 %v265
    %v305 = vunpack.c.l.b16 %v266
    %v306 = vunpack.c.l.b16 %v267
    %v307 = vunpack.c.l.b16 %v268
    %v308 = vunpack.c.l.b16 %v269
    %v309 = vunpack.c.l.b16 %v270
    %v310 = vunpack.c.l.b16 %v271
    %v311 = vunpack.c.l.b16 %v272
    %v312 = vunpack.c.l.b16 %v273
    %v313 = vunpack.c.l.b16 %v274
    %v314 = vunpack.c.l.b16 %v275
    %v315 = vunpack.c.l.b16 %v276
    %v316 = vunpack.c.l.b16 %v277
    %v317 = vunpack.c.l.b16 %v278
    %v318 = vunpack.c.l.b16 %v279
    %v319 = vpack.c.b16 %v304, %v303
    %v320 = vpack.c.b16 %v306, %v305
    %v321 = vpack.c.b16 %v308, %v307
    %v322 = vpack.c.b16 %v310, %v309
    %v323 = vpack.c.b16 %v312, %v311
    %v324 = vpack.c.b16 %v314, %v313
    %v325 = vpack.c.b16 %v316, %v315
    %v326 = vpack.c.b16 %v318, %v317
    %335 = vmatprep.subr.bf16.mxu0 0
    %336 = vmatpush1.bf16.msra.mxu0 %v326
    %337 = vmatprep.subr.bf16.mxu0 0
    %338 = vmatpush1.bf16.msra.mxu0 %v325
    %339 = vmatprep.subr.bf16.mxu0 0
    %340 = vmatpush1.bf16.msra.mxu0 %v324
    %341 = vmatprep.subr.bf16.mxu0 0
    %342 = vmatpush1.bf16.msra.mxu0 %v323
    %343 = vmatprep.subr.bf16.mxu0 0
    %344 = vmatpush1.bf16.msra.mxu0 %v322
    %345 = vmatprep.subr.bf16.mxu0 0
    %346 = vmatpush1.bf16.msra.mxu0 %v321
    %347 = vmatprep.subr.bf16.mxu0 0
    %348 = vmatpush1.bf16.msra.mxu0 %v320
    %349 = vmatprep.subr.bf16.mxu0 0
    %350 = vmatpush1.bf16.msra.mxu0 %v319
    %351 = vmatprep.subr.bf16.mxu0 0
    %352 = vmatpush2.bf16.msra.mxu0 0
    %353 = vmatprep.subr.bf16.mxu0 0
    %354 = vmatpush2.bf16.msra.mxu0 0
    %355 = vmatprep.subr.bf16.mxu0 0
    %356 = vmatpush2.bf16.msra.mxu0 0
    %357 = vmatprep.subr.bf16.mxu0 0
    %358 = vmatpush2.bf16.msra.mxu0 0
    %359 = vmatprep.subr.bf16.mxu0 0
    %360 = vmatpush2.bf16.msra.mxu0 0
    %361 = vmatprep.subr.bf16.mxu0 0
    %362 = vmatpush2.bf16.msra.mxu0 0
    %363 = vmatprep.subr.bf16.mxu0 0
    %364 = vmatpush2.bf16.msra.mxu0 0
    %365 = vmatprep.subr.bf16.mxu0 0
    %366 = vmatpush2.bf16.msra.mxu0 0
    %367 = vmatprep.mubr.bf16.mxu0 0
    %368 = vmatmul.mubr.bf16.gmra.mxu0 %v263
    %v369 = vpop.f32.mrf.mxu0
    %v370 = vadd.f32 %v285, %v369
    %v371 = vpop.f32.mrf.mxu0
    %v372 = vpop.f32.mrf.mxu0
    %v373 = vpop.f32.mrf.mxu0
    %374 = vdwg.mxu0
    %v375 = vmax.f32 %v370, 0.0
    %v376 = vpack.c.bf16 %v375, %v375
    %v377 = vld [vmem:[%s7] sm:$0xf]
    %v378 = vld [vmem:[%s7 + $0x4] sm:$0xf]
    %v379 = vld [vmem:[%s7 + $0x8] sm:$0xf]
    %v380 = vld [vmem:[%s7 + $0xc] sm:$0xf]
    %v381 = vld [vmem:[%s7 + $0x10] sm:$0xf]
    %v382 = vld [vmem:[%s7 + $0x14] sm:$0xf]
    %v383 = vld [vmem:[%s7 + $0x18] sm:$0xf]
    %v384 = vld [vmem:[%s7 + $0x1c] sm:$0xf]
    %v385 = vld [vmem:[%s7 + $0x20] sm:$0xf]
    %v386 = vld [vmem:[%s7 + $0x24] sm:$0xf]
    %v387 = vld [vmem:[%s7 + $0x28] sm:$0xf]
    %v388 = vld [vmem:[%s7 + $0x2c] sm:$0xf]
    %v389 = vld [vmem:[%s7 + $0x30] sm:$0xf]
    %v390 = vld [vmem:[%s7 + $0x34] sm:$0xf]
    %v391 = vld [vmem:[%s7 + $0x38] sm:$0xf]
    %v392 = vld [vmem:[%s7 + $0x3c] sm:$0xf]
    %v393 = vld [vmem:[%s8] sm:$0x1]
    %v395 = vlaneseq
    %v396 = vshrl.u32 %v395, 7
    %v397 = vsub.s32 0, %v396
    %v398 = vrot.slane %v393, %v397
    %v416 = vunpack.c.l.b16 %v377
    %v417 = vunpack.c.l.b16 %v378
    %v418 = vunpack.c.l.b16 %v379
    %v419 = vunpack.c.l.b16 %v380
    %v420 = vunpack.c.l.b16 %v381
    %v421 = vunpack.c.l.b16 %v382
    %v422 = vunpack.c.l.b16 %v383
    %v423 = vunpack.c.l.b16 %v384
    %v424 = vunpack.c.l.b16 %v385
    %v425 = vunpack.c.l.b16 %v386
    %v426 = vunpack.c.l.b16 %v387
    %v427 = vunpack.c.l.b16 %v388
    %v428 = vunpack.c.l.b16 %v389
    %v429 = vunpack.c.l.b16 %v390
    %v430 = vunpack.c.l.b16 %v391
    %v431 = vunpack.c.l.b16 %v392
    %v432 = vpack.c.b16 %v417, %v416
    %v433 = vpack.c.b16 %v419, %v418
    %v434 = vpack.c.b16 %v421, %v420
    %v435 = vpack.c.b16 %v423, %v422
    %v436 = vpack.c.b16 %v425, %v424
    %v437 = vpack.c.b16 %v427, %v426
    %v438 = vpack.c.b16 %v429, %v428
    %v439 = vpack.c.b16 %v431, %v430
    %448 = vmatprep.subr.bf16.mxu0 0
    %449 = vmatpush1.bf16.msra.mxu0 %v439
    %450 = vmatprep.subr.bf16.mxu0 0
    %451 = vmatpush1.bf16.msra.mxu0 %v438
    %452 = vmatprep.subr.bf16.mxu0 0
    %453 = vmatpush1.bf16.msra.mxu0 %v437
    %454 = vmatprep.subr.bf16.mxu0 0
    %455 = vmatpush1.bf16.msra.mxu0 %v436
    %456 = vmatprep.subr.bf16.mxu0 0
    %457 = vmatpush1.bf16.msra.mxu0 %v435
    %458 = vmatprep.subr.bf16.mxu0 0
    %459 = vmatpush1.bf16.msra.mxu0 %v434
    %460 = vmatprep.subr.bf16.mxu0 0
    %461 = vmatpush1.bf16.msra.mxu0 %v433
    %462 = vmatprep.subr.bf16.mxu0 0
    %463 = vmatpush1.bf16.msra.mxu0 %v432
    %464 = vmatprep.subr.bf16.mxu0 0
    %465 = vmatpush2.bf16.msra.mxu0 0
    %466 = vmatprep.subr.bf16.mxu0 0
    %467 = vmatpush2.bf16.msra.mxu0 0
    %468 = vmatprep.subr.bf16.mxu0 0
    %469 = vmatpush2.bf16.msra.mxu0 0
    %470 = vmatprep.subr.bf16.mxu0 0
    %471 = vmatpush2.bf16.msra.mxu0 0
    %472 = vmatprep.subr.bf16.mxu0 0
    %473 = vmatpush2.bf16.msra.mxu0 0
    %474 = vmatprep.subr.bf16.mxu0 0
    %475 = vmatpush2.bf16.msra.mxu0 0
    %476 = vmatprep.subr.bf16.mxu0 0
    %477 = vmatpush2.bf16.msra.mxu0 0
    %478 = vmatprep.subr.bf16.mxu0 0
    %479 = vmatpush2.bf16.msra.mxu0 0
    %480 = vmatprep.mubr.bf16.mxu0 0
    %481 = vmatmul.mubr.bf16.gmra.mxu0 %v376
    %v482 = vpop.f32.mrf.mxu0
    %v483 = vadd.f32 %v398, %v482
    %v484 = vpop.f32.mrf.mxu0
    %v485 = vpop.f32.mrf.mxu0
    %v486 = vpop.f32.mrf.mxu0
    %487 = vdwg.mxu0
    %488 = vst [vmem:[#allocation4] sm:$0xff] %v483
    // Predicated region
    $region38: #{autoencoder_forward.1} parent=1 // pred_check
      _
    $region39: #{autoencoder_forward.1} parent=1 // pred_check_branch
      %490 = sbr.rel (0) target = $region41
    $region40: #{autoencoder_forward.1} parent=1 // pred_region
      %s492 = ssub.s32 128, 128
      %493 = vsyncadd [#allocation3], %s492
      %s495 = sshll.u32 [#allocation2], 4
      %s496 = int_to_ptr.vmem [resolvable:$true] %s495
      %498 = dma.vmem_to_hbm [thread:$0]  %s496, 128, %s9, [#allocation3]
    $region41: #{autoencoder_forward.1} parent=1 // pred_fallthru
      _
    // Predicated region
    $region42: #{autoencoder_forward.1} parent=1 // pred_check
      _
    $region43: #{autoencoder_forward.1} parent=1 // pred_check_branch
      %500 = sbr.rel (0) target = $region45
    $region44: #{autoencoder_forward.1} parent=1 // pred_region
      %s502 = ssub.s32 128, 128
      %503 = vsyncadd [#allocation5], %s502
      %s505 = sshll.u32 [#allocation4], 4
      %s506 = int_to_ptr.vmem [resolvable:$true] %s505
      %508 = dma.vmem_to_hbm [thread:$0]  %s506, 128, %s10, [#allocation5]
    $region45: #{autoencoder_forward.1} parent=1 // pred_fallthru
      _
    // Predicated region
    $region46: #{autoencoder_forward.1} parent=1 // pred_check
      _
    $region47: #{autoencoder_forward.1} parent=1 // pred_check_branch
      %510 = sbr.rel (0) target = $region49
    $region48: #{autoencoder_forward.1} parent=1 // pred_region
      %511 = dma.done [#allocation3], 128
    $region49: #{autoencoder_forward.1} parent=1 // pred_fallthru
      _
    // Predicated region
    $region50: #{autoencoder_forward.1} parent=1 // pred_check
      _
    $region51: #{autoencoder_forward.1} parent=1 // pred_check_branch
      %513 = sbr.rel (0) target = $region53
    $region52: #{autoencoder_forward.1} parent=1 // pred_region
      %514 = dma.done [#allocation5], 128
    $region53: #{autoencoder_forward.1} parent=1 // pred_fallthru
      _
    %515 = vsyncpa [#allocation3], 1
    %516 = vsyncpa [#allocation5], 1

</llo_original>
